<compile_context>
chip_gen: v6e
topology: v6e:2x2x1
jax: 0.10.0
libtpu: 0.0.40
codegen_flags: <defaults>
</compile_context>

<pallas_src>
import functools

import jax
import jax.numpy as jnp
from jax.experimental import pallas as pl
from jax.experimental.pallas import tpu as pltpu


OUT_PAD = 128   # lane-dense padded class dimension (real classes = 3)
V_PAD = 128     # padded alphabet rows of the folded table (real V = 27)


def model_kernel(ids_ref, ew_ref, b_ref, o_ref):
    # ids_ref: (B_TILE, L)       int32 -- token indices for this batch tile
    # ew_ref:  (V_PAD, OUT_PAD)  f32   -- folded table (E @ W), zero padded
    # b_ref:   (1, OUT_PAD)      f32   -- bias, zero padded
    # o_ref:   (B_TILE, OUT_PAD) f32   -- sigmoid(logits); cols [3:] are junk
    ids = ids_ref[...]                                  # (B_TILE, L)
    b_tile, seq_len = ids.shape
    v_pad = ew_ref.shape[0]

    # One-hot counts over the alphabet: counts[b, v] = #{l : ids[b, l] == v}.
    vocab_iota = jax.lax.broadcasted_iota(jnp.int32, (b_tile, v_pad), 1)
    counts = jnp.zeros((b_tile, v_pad), jnp.float32)
    for l in range(seq_len):                            # small static L -> unrolled
        counts = counts + (vocab_iota == ids[:, l:l + 1]).astype(jnp.float32)

    # (counts / L) @ EW == mean over L of EW[ids]: gather + avg-pool + linear
    # collapse into a single MXU matmul.
    logits = jnp.dot(counts * (1.0 / seq_len), ew_ref[...],
                     preferred_element_type=jnp.float32)   # (B_TILE, OUT_PAD)
    logits = logits + b_ref[...]                           # broadcast bias
    o_ref[...] = 1.0 / (1.0 + jnp.exp(-logits))            # torch.sigmoid


@functools.partial(jax.jit, static_argnames=("b_tile",))
def torch_model_forward(x_ids, emb_table, w, b, *, b_tile=128):
    """x_ids: (B, L) int indices; emb_table: (V, D); w: (D, 3); b: (3,)."""
    B, L = x_ids.shape
    V, D = emb_table.shape
    n_cls = w.shape[1]

    # Fold the Linear into the tiny (V, D) embedding table once, in JAX.
    ew = emb_table.astype(jnp.float32) @ w.astype(jnp.float32)          # (V, 3)
    ew_pad = jnp.zeros((V_PAD, OUT_PAD), jnp.float32).at[:V, :n_cls].set(ew)
    b_pad = jnp.zeros((1, OUT_PAD), jnp.float32).at[0, :n_cls].set(
        b.astype(jnp.float32))

    # Pad batch to a multiple of the tile (padded rows are sliced off below).
    ids = x_ids.astype(jnp.int32)
    n_tiles = pl.cdiv(B, b_tile)
    Bp = n_tiles * b_tile
    if Bp != B:
        ids = jnp.pad(ids, ((0, Bp - B), (0, 0)))

    out = pl.pallas_call(
        model_kernel,
        out_shape=jax.ShapeDtypeStruct((Bp, OUT_PAD), jnp.float32),
        grid=(n_tiles,),
        in_specs=[
            pl.BlockSpec((b_tile, L), lambda i: (i, 0)),        # id tile
            pl.BlockSpec((V_PAD, OUT_PAD), lambda i: (0, 0)),   # folded table (resident)
            pl.BlockSpec((1, OUT_PAD), lambda i: (0, 0)),       # bias (resident)
        ],
        out_specs=pl.BlockSpec((b_tile, OUT_PAD), lambda i: (i, 0)),
        compiler_params=pltpu.CompilerParams(
            dimension_semantics=("parallel",)),
    )(ids, ew_pad, b_pad)

    return out[:B, :n_cls]


def reference_forward(x_ids, emb_table, w, b):
    emb = jnp.take(emb_table, x_ids, axis=0)            # (B, L, D)
    pooled = jnp.mean(emb, axis=1)                      # AvgPool1d(L) + squeeze
    logits = pooled @ w + b                             # (B, 3)
    return jax.nn.sigmoid(logits)


if __name__ == "__main__":
    # Shapes consistent with the module: alphabet V=27 ("abc...z" + pad),
    # vector_dim D=32, word_length L=8.  Batch large enough to exercise the
    # batch-tiled parallel grid (two tiles of 128).
    V, D, L, B = 27, 32, 8, 256

    key = jax.random.PRNGKey(0)
    k_emb, k_w, k_b, k_x = jax.random.split(key, 4)

    emb_table = jax.random.normal(k_emb, (V, D), dtype=jnp.float32)
    # nn.Linear(D, 3): PyTorch weight is (3, D); we store its transpose (D, 3).
    w = jax.random.normal(k_w, (D, 3), dtype=jnp.float32) * 0.1
    b = jax.random.normal(k_b, (3,), dtype=jnp.float32) * 0.1

    x_ids = jax.random.randint(k_x, (B, L), 0, V, dtype=jnp.int32)

    y_pred = torch_model_forward(x_ids, emb_table, w, b)
    y_pred = jax.block_until_ready(y_pred)

    y_ref = reference_forward(x_ids, emb_table, w, b)
    assert y_pred.shape == (B, 3)
    assert jnp.allclose(y_pred, y_ref, atol=1e-5, rtol=1e-5), "mismatch vs reference"

    print("KERNEL_OK")
</pallas_src>

<mosaic_0001>
module attributes {stable_mosaic.version = 11 : i64} {
  func.func @model_kernel(%arg0: i32, %arg1: memref<128x8xi32, #tpu.memory_space<vmem>>, %arg2: memref<128x128xf32, #tpu.memory_space<vmem>>, %arg3: memref<1x128xf32, #tpu.memory_space<vmem>>, %arg4: memref<128x128xf32, #tpu.memory_space<vmem>>) attributes {dimension_semantics = [#tpu.dimension_semantics<parallel>], iteration_bounds = array<i64: 2>, scalar_prefetch = 0 : i64, scratch_operands = 0 : i64, tpu.core_type = #tpu.core_type<tc>, window_params = [{transform_indices = @transform_0, window_bounds = array<i64: 128, 8>}, {pipeline_mode = #tpu.pipeline_mode<synchronous>, transform_indices = @transform_1, window_bounds = array<i64: 128, 128>}, {pipeline_mode = #tpu.pipeline_mode<synchronous>, transform_indices = @transform_2, window_bounds = array<i64: 1, 128>}, {transform_indices = @transform_3, window_bounds = array<i64: 128, 128>}]} {
    %c0 = arith.constant 0 : index
    %c0_0 = arith.constant 0 : index
    %0 = vector.load %arg1[%c0, %c0_0] : memref<128x8xi32, #tpu.memory_space<vmem>>, vector<128x8xi32>
    %1 = tpu.iota {dimensions = array<i32: 1>} : vector<128x128xi32>
    %cst = arith.constant 0.000000e+00 : f32
    %2 = vector.broadcast %cst : f32 to vector<128x128xf32>
    %3 = vector.extract_strided_slice %0 {offsets = [0, 0], sizes = [128, 1], strides = [1, 1]} : vector<128x8xi32> to vector<128x1xi32>
    %4 = vector.broadcast %3 : vector<128x1xi32> to vector<128x128xi32>
    %5 = arith.cmpi eq, %1, %4 : vector<128x128xi32>
    %6 = arith.extui %5 : vector<128x128xi1> to vector<128x128xi32>
    %7 = arith.sitofp %6 : vector<128x128xi32> to vector<128x128xf32>
    %8 = arith.addf %2, %7 : vector<128x128xf32>
    %9 = vector.extract_strided_slice %0 {offsets = [0, 1], sizes = [128, 1], strides = [1, 1]} : vector<128x8xi32> to vector<128x1xi32>
    %10 = vector.broadcast %9 : vector<128x1xi32> to vector<128x128xi32>
    %11 = arith.cmpi eq, %1, %10 : vector<128x128xi32>
    %12 = arith.extui %11 : vector<128x128xi1> to vector<128x128xi32>
    %13 = arith.sitofp %12 : vector<128x128xi32> to vector<128x128xf32>
    %14 = arith.addf %8, %13 : vector<128x128xf32>
    %15 = vector.extract_strided_slice %0 {offsets = [0, 2], sizes = [128, 1], strides = [1, 1]} : vector<128x8xi32> to vector<128x1xi32>
    %16 = vector.broadcast %15 : vector<128x1xi32> to vector<128x128xi32>
    %17 = arith.cmpi eq, %1, %16 : vector<128x128xi32>
    %18 = arith.extui %17 : vector<128x128xi1> to vector<128x128xi32>
    %19 = arith.sitofp %18 : vector<128x128xi32> to vector<128x128xf32>
    %20 = arith.addf %14, %19 : vector<128x128xf32>
    %21 = vector.extract_strided_slice %0 {offsets = [0, 3], sizes = [128, 1], strides = [1, 1]} : vector<128x8xi32> to vector<128x1xi32>
    %22 = vector.broadcast %21 : vector<128x1xi32> to vector<128x128xi32>
    %23 = arith.cmpi eq, %1, %22 : vector<128x128xi32>
    %24 = arith.extui %23 : vector<128x128xi1> to vector<128x128xi32>
    %25 = arith.sitofp %24 : vector<128x128xi32> to vector<128x128xf32>
    %26 = arith.addf %20, %25 : vector<128x128xf32>
    %27 = vector.extract_strided_slice %0 {offsets = [0, 4], sizes = [128, 1], strides = [1, 1]} : vector<128x8xi32> to vector<128x1xi32>
    %28 = vector.broadcast %27 : vector<128x1xi32> to vector<128x128xi32>
    %29 = arith.cmpi eq, %1, %28 : vector<128x128xi32>
    %30 = arith.extui %29 : vector<128x128xi1> to vector<128x128xi32>
    %31 = arith.sitofp %30 : vector<128x128xi32> to vector<128x128xf32>
    %32 = arith.addf %26, %31 : vector<128x128xf32>
    %33 = vector.extract_strided_slice %0 {offsets = [0, 5], sizes = [128, 1], strides = [1, 1]} : vector<128x8xi32> to vector<128x1xi32>
    %34 = vector.broadcast %33 : vector<128x1xi32> to vector<128x128xi32>
    %35 = arith.cmpi eq, %1, %34 : vector<128x128xi32>
    %36 = arith.extui %35 : vector<128x128xi1> to vector<128x128xi32>
    %37 = arith.sitofp %36 : vector<128x128xi32> to vector<128x128xf32>
    %38 = arith.addf %32, %37 : vector<128x128xf32>
    %39 = vector.extract_strided_slice %0 {offsets = [0, 6], sizes = [128, 1], strides = [1, 1]} : vector<128x8xi32> to vector<128x1xi32>
    %40 = vector.broadcast %39 : vector<128x1xi32> to vector<128x128xi32>
    %41 = arith.cmpi eq, %1, %40 : vector<128x128xi32>
    %42 = arith.extui %41 : vector<128x128xi1> to vector<128x128xi32>
    %43 = arith.sitofp %42 : vector<128x128xi32> to vector<128x128xf32>
    %44 = arith.addf %38, %43 : vector<128x128xf32>
    %45 = vector.extract_strided_slice %0 {offsets = [0, 7], sizes = [128, 1], strides = [1, 1]} : vector<128x8xi32> to vector<128x1xi32>
    %46 = vector.broadcast %45 : vector<128x1xi32> to vector<128x128xi32>
    %47 = arith.cmpi eq, %1, %46 : vector<128x128xi32>
    %48 = arith.extui %47 : vector<128x128xi1> to vector<128x128xi32>
    %49 = arith.sitofp %48 : vector<128x128xi32> to vector<128x128xf32>
    %50 = arith.addf %44, %49 : vector<128x128xf32>
    %cst_1 = arith.constant 1.250000e-01 : f32
    %51 = vector.broadcast %cst_1 : f32 to vector<128x128xf32>
    %52 = arith.mulf %50, %51 : vector<128x128xf32>
    %c0_2 = arith.constant 0 : index
    %c0_3 = arith.constant 0 : index
    %53 = vector.load %arg2[%c0_2, %c0_3] : memref<128x128xf32, #tpu.memory_space<vmem>>, vector<128x128xf32>
    %cst_4 = arith.constant dense<0.000000e+00> : vector<128x128xf32>
    %54 = tpu.matmul %52, %53, %cst_4 {dimension_numbers = #tpu.dot_dimension_numbers<[1], [0], [0], [1], [0, 0, 1, 1], [], []>} : vector<128x128xf32>, vector<128x128xf32>, vector<128x128xf32> -> vector<128x128xf32>
    %c0_5 = arith.constant 0 : index
    %c0_6 = arith.constant 0 : index
    %55 = vector.load %arg3[%c0_5, %c0_6] : memref<1x128xf32, #tpu.memory_space<vmem>>, vector<1x128xf32>
    %56 = vector.broadcast %55 : vector<1x128xf32> to vector<128x128xf32>
    %57 = arith.addf %54, %56 : vector<128x128xf32>
    %cst_7 = arith.constant 0.000000e+00 : f32
    %58 = vector.broadcast %cst_7 : f32 to vector<128x128xf32>
    %59 = arith.subf %58, %57 : vector<128x128xf32>
    %60 = math.exp %59 : vector<128x128xf32>
    %cst_8 = arith.constant 1.000000e+00 : f32
    %61 = vector.broadcast %cst_8 : f32 to vector<128x128xf32>
    %62 = arith.addf %61, %60 : vector<128x128xf32>
    %cst_9 = arith.constant 1.000000e+00 : f32
    %63 = vector.broadcast %cst_9 : f32 to vector<128x128xf32>
    %64 = arith.divf %63, %62 : vector<128x128xf32>
    %c0_10 = arith.constant 0 : index
    %c0_11 = arith.constant 0 : index
    %65 = vector.load %arg4[%c0_10, %c0_11] : memref<128x128xf32, #tpu.memory_space<vmem>>, vector<128x128xf32>
    tpu.vector_store %arg4[%c0_10, %c0_11], %64 {strides = array<i32>} : memref<128x128xf32, #tpu.memory_space<vmem>>, vector<128x128xf32>,
    return
  }
  func.func @transform_0(%arg0: i32) -> (i32, i32) {
    %c0_i32 = arith.constant 0 : i32
    %c0_i32_0 = arith.constant 0 : i32
    return %arg0, %c0_i32 : i32, i32
  }
  func.func @transform_1(%arg0: i32) -> (i32, i32) {
    %c0_i32 = arith.constant 0 : i32
    %c0_i32_0 = arith.constant 0 : i32
    %c0_i32_1 = arith.constant 0 : i32
    return %c0_i32, %c0_i32_0 : i32, i32
  }
  func.func @transform_2(%arg0: i32) -> (i32, i32) {
    %c0_i32 = arith.constant 0 : i32
    %c0_i32_0 = arith.constant 0 : i32
    %c0_i32_1 = arith.constant 0 : i32
    return %c0_i32, %c0_i32_0 : i32, i32
  }
  func.func @transform_3(%arg0: i32) -> (i32, i32) {
    %c0_i32 = arith.constant 0 : i32
    %c0_i32_0 = arith.constant 0 : i32
    return %arg0, %c0_i32 : i32, i32
  }
}

</mosaic_0001>

<llo_original>
// kernel: torch_model_forward.1
$region0: #{torch_model_forward.1}
  #allocation0 [shape = 'u32[]', space=smem, size = 0x4, offset = 0x4, fixed_abs, tag = 'smem constant byte address 0x4 - core index']
  #allocation1 [shape = 'u32[144,128]{1,0:T(1,128)}', space=vmem, size = 0x12000, scoped, tag = 'internal scratch']
  %s0 = inlined_call_operand.vmem [shape: s32[256,8], index: 0, kind: input, shape index: {}]
  %s1 = inlined_call_operand.vmem [shape: f32[128,128], index: 1, kind: input, shape index: {}]
  %s2 = inlined_call_operand.vmem [shape: f32[1,128], index: 2, kind: input, shape index: {}]
  %s3 = inlined_call_operand.vmem [shape: f32[256,128], index: 3, kind: output, shape index: {}]
  %s4 = sld [smem:[#allocation0]]
  $region45: #{torch_model_forward.1} parent=0
    _
  %s6 = ssub.s32 1, %s4
  %s7 = scalar_select 0, %s6, %s4
  loop: start=0, step=1, limit=4
  $region2: #{torch_model_forward.1} parent=0 // loop_pre_header
    _
  $region3: #{torch_model_forward.1} parent=0 // loop_header
    %s9 = sphi 0, %s13
    %p10 = scmp.ge.s32.totalorder %s9, 4
    %s19 = sphi 0, %s21
    %s22 = sphi 0, %s19
    %s23 = sphi 0, %s22
    %s39 = sphi 0, %s23
    %s43 = sphi 0, %s43
    %s45 = sphi 0, %s43
    %s46 = sphi 0, %s45
    %s60 = sphi 0, %s46
    %s64 = sphi 0, %s64
    %s66 = sphi 0, %s64
    %s67 = sphi 0, %s66
    %s81 = sphi 0, %s67
    %s87 = sphi 0, %s89
    %s90 = sphi 0, %s87
    %s91 = sphi 0, %s90
    %s107 = sphi 0, %s91
  $region4: #{torch_model_forward.1} parent=0 // loop_header_branch
    %12 = sbr.rel (%p10) target = $region8
  $region5: #{torch_model_forward.1} parent=0 // loop_body
    %s14 = ssub.s32 %s9, 1
    %s15 = ssub.s32 %s9, 2
    %s16 = sadd.s32 %s9, 1
    %s17 = ssub.s32 %s9, %s16
    %p18 = scmp.eq.s32.totalorder %s17, 0
    %s20 = sadd.s32 %s19, 1
    %s21 = scalar_select %p18, %s19, %s20
    %p24 = pneg %p18
    %p25 = scmp.eq.s32.totalorder %s9, 1
    %p26 = por %p24, %p25
    %p27 = scmp.ne.s32.totalorder %s19, %s22
    %p28 = scmp.eq.s32.totalorder %s9, 0
    %p29 = por %p27, %p28
    %p30 = scmp.ne.s32.totalorder %s19, %s22
    %p31 = scmp.eq.s32.totalorder %s14, 1
    %p32 = por %p30, %p31
    %p33 = scmp.ne.s32.totalorder %s22, %s23
    %p34 = scmp.eq.s32.totalorder %s14, 0
    %p35 = por %p33, %p34
    %p36 = scmp.ne.s32.totalorder %s22, %s23
    %p37 = scmp.eq.s32.totalorder %s15, 1
    %p38 = por %p36, %p37
    %p40 = scmp.ne.s32.totalorder %s23, %s39
    %p41 = scmp.eq.s32.totalorder %s15, 0
    %p42 = por %p40, %p41
    %s44 = sadd.s32 %s43, 1
    %p47 = scmp.eq.s32.totalorder %s9, 1
    %p48 = scmp.ne.s32.totalorder %s43, %s45
    %p49 = scmp.eq.s32.totalorder %s9, 0
    %p50 = por %p48, %p49
    %p51 = scmp.ne.s32.totalorder %s43, %s45
    %p52 = scmp.eq.s32.totalorder %s14, 1
    %p53 = por %p51, %p52
    %p54 = scmp.ne.s32.totalorder %s45, %s46
    %p55 = scmp.eq.s32.totalorder %s14, 0
    %p56 = por %p54, %p55
    %p57 = scmp.ne.s32.totalorder %s45, %s46
    %p58 = scmp.eq.s32.totalorder %s15, 1
    %p59 = por %p57, %p58
    %p61 = scmp.ne.s32.totalorder %s46, %s60
    %p62 = scmp.eq.s32.totalorder %s15, 0
    %p63 = por %p61, %p62
    %s65 = sadd.s32 %s64, 1
    %p68 = scmp.eq.s32.totalorder %s9, 1
    %p69 = scmp.ne.s32.totalorder %s64, %s66
    %p70 = scmp.eq.s32.totalorder %s9, 0
    %p71 = por %p69, %p70
    %p72 = scmp.ne.s32.totalorder %s64, %s66
    %p73 = scmp.eq.s32.totalorder %s14, 1
    %p74 = por %p72, %p73
    %p75 = scmp.ne.s32.totalorder %s66, %s67
    %p76 = scmp.eq.s32.totalorder %s14, 0
    %p77 = por %p75, %p76
    %p78 = scmp.ne.s32.totalorder %s66, %s67
    %p79 = scmp.eq.s32.totalorder %s15, 1
    %p80 = por %p78, %p79
    %p82 = scmp.ne.s32.totalorder %s67, %s81
    %p83 = scmp.eq.s32.totalorder %s15, 0
    %p84 = por %p82, %p83
    %s85 = ssub.s32 %s9, %s16
    %p86 = scmp.eq.s32.totalorder %s85, 0
    %s88 = sadd.s32 %s87, 1
    %s89 = scalar_select %p86, %s87, %s88
    %p92 = pneg %p86
    %p93 = scmp.eq.s32.totalorder %s9, 1
    %p94 = por %p92, %p93
    %p95 = scmp.ne.s32.totalorder %s87, %s90
    %p96 = scmp.eq.s32.totalorder %s9, 0
    %p97 = por %p95, %p96
    %p98 = scmp.ne.s32.totalorder %s87, %s90
    %p99 = scmp.eq.s32.totalorder %s14, 1
    %p100 = por %p98, %p99
    %p101 = scmp.ne.s32.totalorder %s90, %s91
    %p102 = scmp.eq.s32.totalorder %s14, 0
    %p103 = por %p101, %p102
    %p104 = scmp.ne.s32.totalorder %s90, %s91
    %p105 = scmp.eq.s32.totalorder %s15, 1
    %p106 = por %p104, %p105
    %p108 = scmp.ne.s32.totalorder %s91, %s107
    %p109 = scmp.eq.s32.totalorder %s15, 0
    %p110 = por %p108, %p109
    %p111 = scmp.le.s32.totalorder 1, %s9
    %p112 = scmp.lt.s32.totalorder %s9, 3
    %p113 = pnand %p111, %p112
    %p114 = pneg %p113
    // Predicated region
    $region9: #{torch_model_forward.1} parent=5 // pred_check
      _
    $region10: #{torch_model_forward.1} parent=5 // pred_check_branch
      %116 = sbr.rel (%p113) target = $region12
    $region11: #{torch_model_forward.1} parent=5 // pred_region
      %s117 = ssub.s32 %s9, 1
      // Predicated region
      $region13: #{torch_model_forward.1} parent=11 // pred_check
        %p118 = pneg %p56
      $region14: #{torch_model_forward.1} parent=11 // pred_check_branch
        %120 = sbr.rel (%p118) target = $region16
      $region15: #{torch_model_forward.1} parent=11 // pred_region
        _
      $region16: #{torch_model_forward.1} parent=11 // pred_fallthru
        _
      // Predicated region
      $region17: #{torch_model_forward.1} parent=11 // pred_check
        %p121 = pneg %p77
      $region18: #{torch_model_forward.1} parent=11 // pred_check_branch
        %123 = sbr.rel (%p121) target = $region20
      $region19: #{torch_model_forward.1} parent=11 // pred_region
        _
      $region20: #{torch_model_forward.1} parent=11 // pred_fallthru
        _
    $region12: #{torch_model_forward.1} parent=5 // pred_fallthru
      _
    %p124 = scmp.lt.s32.totalorder %s9, 2
    // Predicated region
    $region21: #{torch_model_forward.1} parent=5 // pred_check
      %p125 = pneg %p124
    $region22: #{torch_model_forward.1} parent=5 // pred_check_branch
      %127 = sbr.rel (%p125) target = $region24
    $region23: #{torch_model_forward.1} parent=5 // pred_region
      // Predicated region
      $region25: #{torch_model_forward.1} parent=23 // pred_check
        %p128 = pneg %p29
      $region26: #{torch_model_forward.1} parent=23 // pred_check_branch
        %130 = sbr.rel (%p128) target = $region28
      $region27: #{torch_model_forward.1} parent=23 // pred_region
        %s131 = smul.u32 16, %s9
        %p132 = scmp.lt.s32.totalorder %s131, 31
        %s133 = scalar_select %p132, %s131, 31
        %s134 = smul.addr %s133, 8
        %s135 = scalar_lea.vmem %s0, %s134
        %s136 = smul.u32 16, %s9
      $region28: #{torch_model_forward.1} parent=23 // pred_fallthru
        _
    $region24: #{torch_model_forward.1} parent=5 // pred_fallthru
      _
    %p137 = scmp.le.s32.totalorder 1, %s9
    %p138 = scmp.lt.s32.totalorder %s9, 3
    %p139 = pnand %p137, %p138
    %p140 = pneg %p139
    // Predicated region
    $region29: #{torch_model_forward.1} parent=5 // pred_check
      _
    $region30: #{torch_model_forward.1} parent=5 // pred_check_branch
      %142 = sbr.rel (%p139) target = $region32
    $region31: #{torch_model_forward.1} parent=5 // pred_region
      %s143 = ssub.s32 %s9, 1
      %s144 = smul.u32 16, %s14
      %p145 = scmp.lt.s32.totalorder %s144, 31
      %s146 = scalar_select %p145, %s144, 31
      %s147 = smul.addr %s146, 8
      %s148 = scalar_lea.vmem %s0, %s147
      %p149 = pneg %p35
      %p150 = pneg %p32
      %p151 = pneg %p56
      %p152 = pneg %p53
      %p153 = pneg %p77
      %p154 = pneg %p74
      %p155 = pneg %p103
      %p156 = pneg %p100
      %s157 = smul.u32 16, %s14
      %p158 = scmp.lt.s32.totalorder %s157, 31
      %s159 = scalar_select %p158, %s157, 31
      %s160 = smul.addr %s159, 8
      %s161 = scalar_lea.vmem %s3, %s160
      %s162 = smul.u32 16, %s14
      %p163 = scmp.lt.s32.totalorder %s162, 31
      %s164 = scalar_select %p163, %s162, 31
      %s165 = smul.addr %s164, 8
      %s166 = scalar_lea.vmem %s0, %s165
      %s167 = smul.u32 16, %s14
      %s168 = smul.u32 16, %s14
      %p169 = scmp.lt.s32.totalorder %s168, 31
      %s170 = scalar_select %p169, %s168, 31
      %s171 = smul.addr %s170, 8
      %s172 = scalar_lea.vmem %s3, %s171
      %s173 = smul.u32 16, %s14
      %v174 = vld [vmem:[%s166] sm:$0xff]
      %v175 = vld [vmem:[%s166 + $0x8] sm:$0xff]
      %v176 = vld [vmem:[%s166 + $0x10] sm:$0xff]
      %v177 = vld [vmem:[%s166 + $0x18] sm:$0xff]
      %v178 = vld [vmem:[%s166 + $0x20] sm:$0xff]
      %v179 = vld [vmem:[%s166 + $0x28] sm:$0xff]
      %v180 = vld [vmem:[%s166 + $0x30] sm:$0xff]
      %v181 = vld [vmem:[%s166 + $0x38] sm:$0xff]
      %v182 = vld [vmem:[%s166 + $0x40] sm:$0xff]
      %v183 = vld [vmem:[%s166 + $0x48] sm:$0xff]
      %v184 = vld [vmem:[%s166 + $0x50] sm:$0xff]
      %v185 = vld [vmem:[%s166 + $0x58] sm:$0xff]
      %v186 = vld [vmem:[%s166 + $0x60] sm:$0xff]
      %v187 = vld [vmem:[%s166 + $0x68] sm:$0xff]
      %v188 = vld [vmem:[%s166 + $0x70] sm:$0xff]
      %v189 = vld [vmem:[%s166 + $0x78] sm:$0xff]
      %v190 = vlaneseq
      %v191 = vand.u32 %v190, 127
      %192 = vset.pattern.permute.xlu0 0
      %193 = vperm.xlu0 %192, %v174
      %v194 = vpop.permute.xlu0 %193
      %195 = vset.pattern.permute.xlu0 0
      %196 = vperm.xlu0 %195, %v175
      %v197 = vpop.permute.xlu0 %196
      %198 = vset.pattern.permute.xlu0 0
      %199 = vperm.xlu0 %198, %v176
      %v200 = vpop.permute.xlu0 %199
      %201 = vset.pattern.permute.xlu0 0
      %202 = vperm.xlu0 %201, %v177
      %v203 = vpop.permute.xlu0 %202
      %204 = vset.pattern.permute.xlu0 0
      %205 = vperm.xlu0 %204, %v178
      %v206 = vpop.permute.xlu0 %205
      %207 = vset.pattern.permute.xlu0 0
      %208 = vperm.xlu0 %207, %v179
      %v209 = vpop.permute.xlu0 %208
      %210 = vset.pattern.permute.xlu0 0
      %211 = vperm.xlu0 %210, %v180
      %v212 = vpop.permute.xlu0 %211
      %213 = vset.pattern.permute.xlu0 0
      %214 = vperm.xlu0 %213, %v181
      %v215 = vpop.permute.xlu0 %214
      %216 = vset.pattern.permute.xlu0 0
      %217 = vperm.xlu0 %216, %v182
      %v218 = vpop.permute.xlu0 %217
      %219 = vset.pattern.permute.xlu0 0
      %220 = vperm.xlu0 %219, %v183
      %v221 = vpop.permute.xlu0 %220
      %222 = vset.pattern.permute.xlu0 0
      %223 = vperm.xlu0 %222, %v184
      %v224 = vpop.permute.xlu0 %223
      %225 = vset.pattern.permute.xlu0 0
      %226 = vperm.xlu0 %225, %v185
      %v227 = vpop.permute.xlu0 %226
      %228 = vset.pattern.permute.xlu0 0
      %229 = vperm.xlu0 %228, %v186
      %v230 = vpop.permute.xlu0 %229
      %231 = vset.pattern.permute.xlu0 0
      %232 = vperm.xlu0 %231, %v187
      %v233 = vpop.permute.xlu0 %232
      %234 = vset.pattern.permute.xlu0 0
      %235 = vperm.xlu0 %234, %v188
      %v236 = vpop.permute.xlu0 %235
      %237 = vset.pattern.permute.xlu0 0
      %238 = vperm.xlu0 %237, %v189
      %v239 = vpop.permute.xlu0 %238
      %vm240 = vcmp.eq.s32.totalorder %v191, %v194
      %vm241 = vcmp.eq.s32.totalorder %v191, %v197
      %vm242 = vcmp.eq.s32.totalorder %v191, %v200
      %vm243 = vcmp.eq.s32.totalorder %v191, %v203
      %vm244 = vcmp.eq.s32.totalorder %v191, %v206
      %vm245 = vcmp.eq.s32.totalorder %v191, %v209
      %vm246 = vcmp.eq.s32.totalorder %v191, %v212
      %vm247 = vcmp.eq.s32.totalorder %v191, %v215
      %vm248 = vcmp.eq.s32.totalorder %v191, %v218
      %vm249 = vcmp.eq.s32.totalorder %v191, %v221
      %vm250 = vcmp.eq.s32.totalorder %v191, %v224
      %vm251 = vcmp.eq.s32.totalorder %v191, %v227
      %vm252 = vcmp.eq.s32.totalorder %v191, %v230
      %vm253 = vcmp.eq.s32.totalorder %v191, %v233
      %vm254 = vcmp.eq.s32.totalorder %v191, %v236
      %vm255 = vcmp.eq.s32.totalorder %v191, %v239
      %v256 = vsel %vm240, 1, 0
      %v257 = vsel %vm241, 1, 0
      %v258 = vsel %vm242, 1, 0
      %v259 = vsel %vm243, 1, 0
      %v260 = vsel %vm244, 1, 0
      %v261 = vsel %vm245, 1, 0
      %v262 = vsel %vm246, 1, 0
      %v263 = vsel %vm247, 1, 0
      %v264 = vsel %vm248, 1, 0
      %v265 = vsel %vm249, 1, 0
      %v266 = vsel %vm250, 1, 0
      %v267 = vsel %vm251, 1, 0
      %v268 = vsel %vm252, 1, 0
      %v269 = vsel %vm253, 1, 0
      %v270 = vsel %vm254, 1, 0
      %v271 = vsel %vm255, 1, 0
      %v272 = vcvt.s32.f32 %v256
      %v273 = vcvt.s32.f32 %v257
      %v274 = vcvt.s32.f32 %v258
      %v275 = vcvt.s32.f32 %v259
      %v276 = vcvt.s32.f32 %v260
      %v277 = vcvt.s32.f32 %v261
      %v278 = vcvt.s32.f32 %v262
      %v279 = vcvt.s32.f32 %v263
      %v280 = vcvt.s32.f32 %v264
      %v281 = vcvt.s32.f32 %v265
      %v282 = vcvt.s32.f32 %v266
      %v283 = vcvt.s32.f32 %v267
      %v284 = vcvt.s32.f32 %v268
      %v285 = vcvt.s32.f32 %v269
      %v286 = vcvt.s32.f32 %v270
      %v287 = vcvt.s32.f32 %v271
      %v288 = vadd.f32 %v272, 0.0
      %v289 = vadd.f32 %v273, 0.0
      %v290 = vadd.f32 %v274, 0.0
      %v291 = vadd.f32 %v275, 0.0
      %v292 = vadd.f32 %v276, 0.0
      %v293 = vadd.f32 %v277, 0.0
      %v294 = vadd.f32 %v278, 0.0
      %v295 = vadd.f32 %v279, 0.0
      %v296 = vadd.f32 %v280, 0.0
      %v297 = vadd.f32 %v281, 0.0
      %v298 = vadd.f32 %v282, 0.0
      %v299 = vadd.f32 %v283, 0.0
      %v300 = vadd.f32 %v284, 0.0
      %v301 = vadd.f32 %v285, 0.0
      %v302 = vadd.f32 %v286, 0.0
      %v303 = vadd.f32 %v287, 0.0
      %304 = vset.pattern.permute.xlu0 1
      %305 = vperm.xlu0 %304, %v174
      %v306 = vpop.permute.xlu0 %305
      %307 = vset.pattern.permute.xlu0 1
      %308 = vperm.xlu0 %307, %v175
      %v309 = vpop.permute.xlu0 %308
      %310 = vset.pattern.permute.xlu0 1
      %311 = vperm.xlu0 %310, %v176
      %v312 = vpop.permute.xlu0 %311
      %313 = vset.pattern.permute.xlu0 1
      %314 = vperm.xlu0 %313, %v177
      %v315 = vpop.permute.xlu0 %314
      %316 = vset.pattern.permute.xlu0 1
      %317 = vperm.xlu0 %316, %v178
      %v318 = vpop.permute.xlu0 %317
      %319 = vset.pattern.permute.xlu0 1
      %320 = vperm.xlu0 %319, %v179
      %v321 = vpop.permute.xlu0 %320
      %322 = vset.pattern.permute.xlu0 1
      %323 = vperm.xlu0 %322, %v180
      %v324 = vpop.permute.xlu0 %323
      %325 = vset.pattern.permute.xlu0 1
      %326 = vperm.xlu0 %325, %v181
      %v327 = vpop.permute.xlu0 %326
      %328 = vset.pattern.permute.xlu0 1
      %329 = vperm.xlu0 %328, %v182
      %v330 = vpop.permute.xlu0 %329
      %331 = vset.pattern.permute.xlu0 1
      %332 = vperm.xlu0 %331, %v183
      %v333 = vpop.permute.xlu0 %332
      %334 = vset.pattern.permute.xlu0 1
      %335 = vperm.xlu0 %334, %v184
      %v336 = vpop.permute.xlu0 %335
      %337 = vset.pattern.permute.xlu0 1
      %338 = vperm.xlu0 %337, %v185
      %v339 = vpop.permute.xlu0 %338
      %340 = vset.pattern.permute.xlu0 1
      %341 = vperm.xlu0 %340, %v186
      %v342 = vpop.permute.xlu0 %341
      %343 = vset.pattern.permute.xlu0 1
      %344 = vperm.xlu0 %343, %v187
      %v345 = vpop.permute.xlu0 %344
      %346 = vset.pattern.permute.xlu0 1
      %347 = vperm.xlu0 %346, %v188
      %v348 = vpop.permute.xlu0 %347
      %349 = vset.pattern.permute.xlu0 1
      %350 = vperm.xlu0 %349, %v189
      %v351 = vpop.permute.xlu0 %350
      %vm352 = vcmp.eq.s32.totalorder %v191, %v306
      %vm353 = vcmp.eq.s32.totalorder %v191, %v309
      %vm354 = vcmp.eq.s32.totalorder %v191, %v312
      %vm355 = vcmp.eq.s32.totalorder %v191, %v315
      %vm356 = vcmp.eq.s32.totalorder %v191, %v318
      %vm357 = vcmp.eq.s32.totalorder %v191, %v321
      %vm358 = vcmp.eq.s32.totalorder %v191, %v324
      %vm359 = vcmp.eq.s32.totalorder %v191, %v327
      %vm360 = vcmp.eq.s32.totalorder %v191, %v330
      %vm361 = vcmp.eq.s32.totalorder %v191, %v333
      %vm362 = vcmp.eq.s32.totalorder %v191, %v336
      %vm363 = vcmp.eq.s32.totalorder %v191, %v339
      %vm364 = vcmp.eq.s32.totalorder %v191, %v342
      %vm365 = vcmp.eq.s32.totalorder %v191, %v345
      %vm366 = vcmp.eq.s32.totalorder %v191, %v348
      %vm367 = vcmp.eq.s32.totalorder %v191, %v351
      %v368 = vsel %vm352, 1, 0
      %v369 = vsel %vm353, 1, 0
      %v370 = vsel %vm354, 1, 0
      %v371 = vsel %vm355, 1, 0
      %v372 = vsel %vm356, 1, 0
      %v373 = vsel %vm357, 1, 0
      %v374 = vsel %vm358, 1, 0
      %v375 = vsel %vm359, 1, 0
      %v376 = vsel %vm360, 1, 0
      %v377 = vsel %vm361, 1, 0
      %v378 = vsel %vm362, 1, 0
      %v379 = vsel %vm363, 1, 0
      %v380 = vsel %vm364, 1, 0
      %v381 = vsel %vm365, 1, 0
      %v382 = vsel %vm366, 1, 0
      %v383 = vsel %vm367, 1, 0
      %v384 = vcvt.s32.f32 %v368
      %v385 = vcvt.s32.f32 %v369
      %v386 = vcvt.s32.f32 %v370
      %v387 = vcvt.s32.f32 %v371
      %v388 = vcvt.s32.f32 %v372
      %v389 = vcvt.s32.f32 %v373
      %v390 = vcvt.s32.f32 %v374
      %v391 = vcvt.s32.f32 %v375
      %v392 = vcvt.s32.f32 %v376
      %v393 = vcvt.s32.f32 %v377
      %v394 = vcvt.s32.f32 %v378
      %v395 = vcvt.s32.f32 %v379
      %v396 = vcvt.s32.f32 %v380
      %v397 = vcvt.s32.f32 %v381
      %v398 = vcvt.s32.f32 %v382
      %v399 = vcvt.s32.f32 %v383
      %v400 = vadd.f32 %v288, %v384
      %v401 = vadd.f32 %v289, %v385
      %v402 = vadd.f32 %v290, %v386
      %v403 = vadd.f32 %v291, %v387
      %v404 = vadd.f32 %v292, %v388
      %v405 = vadd.f32 %v293, %v389
      %v406 = vadd.f32 %v294, %v390
      %v407 = vadd.f32 %v295, %v391
      %v408 = vadd.f32 %v296, %v392
      %v409 = vadd.f32 %v297, %v393
      %v410 = vadd.f32 %v298, %v394
      %v411 = vadd.f32 %v299, %v395
      %v412 = vadd.f32 %v300, %v396
      %v413 = vadd.f32 %v301, %v397
      %v414 = vadd.f32 %v302, %v398
      %v415 = vadd.f32 %v303, %v399
      %416 = vset.pattern.permute.xlu0 2
      %417 = vperm.xlu0 %416, %v174
      %v418 = vpop.permute.xlu0 %417
      %419 = vset.pattern.permute.xlu0 2
      %420 = vperm.xlu0 %419, %v175
      %v421 = vpop.permute.xlu0 %420
      %422 = vset.pattern.permute.xlu0 2
      %423 = vperm.xlu0 %422, %v176
      %v424 = vpop.permute.xlu0 %423
      %425 = vset.pattern.permute.xlu0 2
      %426 = vperm.xlu0 %425, %v177
      %v427 = vpop.permute.xlu0 %426
      %428 = vset.pattern.permute.xlu0 2
      %429 = vperm.xlu0 %428, %v178
      %v430 = vpop.permute.xlu0 %429
      %431 = vset.pattern.permute.xlu0 2
      %432 = vperm.xlu0 %431, %v179
      %v433 = vpop.permute.xlu0 %432
      %434 = vset.pattern.permute.xlu0 2
      %435 = vperm.xlu0 %434, %v180
      %v436 = vpop.permute.xlu0 %435
      %437 = vset.pattern.permute.xlu0 2
      %438 = vperm.xlu0 %437, %v181
      %v439 = vpop.permute.xlu0 %438
      %440 = vset.pattern.permute.xlu0 2
      %441 = vperm.xlu0 %440, %v182
      %v442 = vpop.permute.xlu0 %441
      %443 = vset.pattern.permute.xlu0 2
      %444 = vperm.xlu0 %443, %v183
      %v445 = vpop.permute.xlu0 %444
      %446 = vset.pattern.permute.xlu0 2
      %447 = vperm.xlu0 %446, %v184
      %v448 = vpop.permute.xlu0 %447
      %449 = vset.pattern.permute.xlu0 2
      %450 = vperm.xlu0 %449, %v185
      %v451 = vpop.permute.xlu0 %450
      %452 = vset.pattern.permute.xlu0 2
      %453 = vperm.xlu0 %452, %v186
      %v454 = vpop.permute.xlu0 %453
      %455 = vset.pattern.permute.xlu0 2
      %456 = vperm.xlu0 %455, %v187
      %v457 = vpop.permute.xlu0 %456
      %458 = vset.pattern.permute.xlu0 2
      %459 = vperm.xlu0 %458, %v188
      %v460 = vpop.permute.xlu0 %459
      %461 = vset.pattern.permute.xlu0 2
      %462 = vperm.xlu0 %461, %v189
      %v463 = vpop.permute.xlu0 %462
      %vm464 = vcmp.eq.s32.totalorder %v191, %v418
      %vm465 = vcmp.eq.s32.totalorder %v191, %v421
      %vm466 = vcmp.eq.s32.totalorder %v191, %v424
      %vm467 = vcmp.eq.s32.totalorder %v191, %v427
      %vm468 = vcmp.eq.s32.totalorder %v191, %v430
      %vm469 = vcmp.eq.s32.totalorder %v191, %v433
      %vm470 = vcmp.eq.s32.totalorder %v191, %v436
      %vm471 = vcmp.eq.s32.totalorder %v191, %v439
      %vm472 = vcmp.eq.s32.totalorder %v191, %v442
      %vm473 = vcmp.eq.s32.totalorder %v191, %v445
      %vm474 = vcmp.eq.s32.totalorder %v191, %v448
      %vm475 = vcmp.eq.s32.totalorder %v191, %v451
      %vm476 = vcmp.eq.s32.totalorder %v191, %v454
      %vm477 = vcmp.eq.s32.totalorder %v191, %v457
      %vm478 = vcmp.eq.s32.totalorder %v191, %v460
      %vm479 = vcmp.eq.s32.totalorder %v191, %v463
      %v480 = vsel %vm464, 1, 0
      %v481 = vsel %vm465, 1, 0
      %v482 = vsel %vm466, 1, 0
      %v483 = vsel %vm467, 1, 0
      %v484 = vsel %vm468, 1, 0
      %v485 = vsel %vm469, 1, 0
      %v486 = vsel %vm470, 1, 0
      %v487 = vsel %vm471, 1, 0
      %v488 = vsel %vm472, 1, 0
      %v489 = vsel %vm473, 1, 0
      %v490 = vsel %vm474, 1, 0
      %v491 = vsel %vm475, 1, 0
      %v492 = vsel %vm476, 1, 0
      %v493 = vsel %vm477, 1, 0
      %v494 = vsel %vm478, 1, 0
      %v495 = vsel %vm479, 1, 0
      %v496 = vcvt.s32.f32 %v480
      %v497 = vcvt.s32.f32 %v481
      %v498 = vcvt.s32.f32 %v482
      %v499 = vcvt.s32.f32 %v483
      %v500 = vcvt.s32.f32 %v484
      %v501 = vcvt.s32.f32 %v485
      %v502 = vcvt.s32.f32 %v486
      %v503 = vcvt.s32.f32 %v487
      %v504 = vcvt.s32.f32 %v488
      %v505 = vcvt.s32.f32 %v489
      %v506 = vcvt.s32.f32 %v490
      %v507 = vcvt.s32.f32 %v491
      %v508 = vcvt.s32.f32 %v492
      %v509 = vcvt.s32.f32 %v493
      %v510 = vcvt.s32.f32 %v494
      %v511 = vcvt.s32.f32 %v495
      %v512 = vadd.f32 %v400, %v496
      %v513 = vadd.f32 %v401, %v497
      %v514 = vadd.f32 %v402, %v498
      %v515 = vadd.f32 %v403, %v499
      %v516 = vadd.f32 %v404, %v500
      %v517 = vadd.f32 %v405, %v501
      %v518 = vadd.f32 %v406, %v502
      %v519 = vadd.f32 %v407, %v503
      %v520 = vadd.f32 %v408, %v504
      %v521 = vadd.f32 %v409, %v505
      %v522 = vadd.f32 %v410, %v506
      %v523 = vadd.f32 %v411, %v507
      %v524 = vadd.f32 %v412, %v508
      %v525 = vadd.f32 %v413, %v509
      %v526 = vadd.f32 %v414, %v510
      %v527 = vadd.f32 %v415, %v511
      %528 = vset.pattern.permute.xlu0 3
      %529 = vperm.xlu0 %528, %v174
      %v530 = vpop.permute.xlu0 %529
      %531 = vset.pattern.permute.xlu0 3
      %532 = vperm.xlu0 %531, %v175
      %v533 = vpop.permute.xlu0 %532
      %534 = vset.pattern.permute.xlu0 3
      %535 = vperm.xlu0 %534, %v176
      %v536 = vpop.permute.xlu0 %535
      %537 = vset.pattern.permute.xlu0 3
      %538 = vperm.xlu0 %537, %v177
      %v539 = vpop.permute.xlu0 %538
      %540 = vset.pattern.permute.xlu0 3
      %541 = vperm.xlu0 %540, %v178
      %v542 = vpop.permute.xlu0 %541
      %543 = vset.pattern.permute.xlu0 3
      %544 = vperm.xlu0 %543, %v179
      %v545 = vpop.permute.xlu0 %544
      %546 = vset.pattern.permute.xlu0 3
      %547 = vperm.xlu0 %546, %v180
      %v548 = vpop.permute.xlu0 %547
      %549 = vset.pattern.permute.xlu0 3
      %550 = vperm.xlu0 %549, %v181
      %v551 = vpop.permute.xlu0 %550
      %552 = vset.pattern.permute.xlu0 3
      %553 = vperm.xlu0 %552, %v182
      %v554 = vpop.permute.xlu0 %553
      %555 = vset.pattern.permute.xlu0 3
      %556 = vperm.xlu0 %555, %v183
      %v557 = vpop.permute.xlu0 %556
      %558 = vset.pattern.permute.xlu0 3
      %559 = vperm.xlu0 %558, %v184
      %v560 = vpop.permute.xlu0 %559
      %561 = vset.pattern.permute.xlu0 3
      %562 = vperm.xlu0 %561, %v185
      %v563 = vpop.permute.xlu0 %562
      %564 = vset.pattern.permute.xlu0 3
      %565 = vperm.xlu0 %564, %v186
      %v566 = vpop.permute.xlu0 %565
      %567 = vset.pattern.permute.xlu0 3
      %568 = vperm.xlu0 %567, %v187
      %v569 = vpop.permute.xlu0 %568
      %570 = vset.pattern.permute.xlu0 3
      %571 = vperm.xlu0 %570, %v188
      %v572 = vpop.permute.xlu0 %571
      %573 = vset.pattern.permute.xlu0 3
      %574 = vperm.xlu0 %573, %v189
      %v575 = vpop.permute.xlu0 %574
      %vm576 = vcmp.eq.s32.totalorder %v191, %v530
      %vm577 = vcmp.eq.s32.totalorder %v191, %v533
      %vm578 = vcmp.eq.s32.totalorder %v191, %v536
      %vm579 = vcmp.eq.s32.totalorder %v191, %v539
      %vm580 = vcmp.eq.s32.totalorder %v191, %v542
      %vm581 = vcmp.eq.s32.totalorder %v191, %v545
      %vm582 = vcmp.eq.s32.totalorder %v191, %v548
      %vm583 = vcmp.eq.s32.totalorder %v191, %v551
      %vm584 = vcmp.eq.s32.totalorder %v191, %v554
      %vm585 = vcmp.eq.s32.totalorder %v191, %v557
      %vm586 = vcmp.eq.s32.totalorder %v191, %v560
      %vm587 = vcmp.eq.s32.totalorder %v191, %v563
      %vm588 = vcmp.eq.s32.totalorder %v191, %v566
      %vm589 = vcmp.eq.s32.totalorder %v191, %v569
      %vm590 = vcmp.eq.s32.totalorder %v191, %v572
      %vm591 = vcmp.eq.s32.totalorder %v191, %v575
      %v592 = vsel %vm576, 1, 0
      %v593 = vsel %vm577, 1, 0
      %v594 = vsel %vm578, 1, 0
      %v595 = vsel %vm579, 1, 0
      %v596 = vsel %vm580, 1, 0
      %v597 = vsel %vm581, 1, 0
      %v598 = vsel %vm582, 1, 0
      %v599 = vsel %vm583, 1, 0
      %v600 = vsel %vm584, 1, 0
      %v601 = vsel %vm585, 1, 0
      %v602 = vsel %vm586, 1, 0
      %v603 = vsel %vm587, 1, 0
      %v604 = vsel %vm588, 1, 0
      %v605 = vsel %vm589, 1, 0
      %v606 = vsel %vm590, 1, 0
      %v607 = vsel %vm591, 1, 0
      %v608 = vcvt.s32.f32 %v592
      %v609 = vcvt.s32.f32 %v593
      %v610 = vcvt.s32.f32 %v594
      %v611 = vcvt.s32.f32 %v595
      %v612 = vcvt.s32.f32 %v596
      %v613 = vcvt.s32.f32 %v597
      %v614 = vcvt.s32.f32 %v598
      %v615 = vcvt.s32.f32 %v599
      %v616 = vcvt.s32.f32 %v600
      %v617 = vcvt.s32.f32 %v601
      %v618 = vcvt.s32.f32 %v602
      %v619 = vcvt.s32.f32 %v603
      %v620 = vcvt.s32.f32 %v604
      %v621 = vcvt.s32.f32 %v605
      %v622 = vcvt.s32.f32 %v606
      %v623 = vcvt.s32.f32 %v607
      %v624 = vadd.f32 %v512, %v608
      %v625 = vadd.f32 %v513, %v609
      %v626 = vadd.f32 %v514, %v610
      %v627 = vadd.f32 %v515, %v611
      %v628 = vadd.f32 %v516, %v612
      %v629 = vadd.f32 %v517, %v613
      %v630 = vadd.f32 %v518, %v614
      %v631 = vadd.f32 %v519, %v615
      %v632 = vadd.f32 %v520, %v616
      %v633 = vadd.f32 %v521, %v617
      %v634 = vadd.f32 %v522, %v618
      %v635 = vadd.f32 %v523, %v619
      %v636 = vadd.f32 %v524, %v620
      %v637 = vadd.f32 %v525, %v621
      %v638 = vadd.f32 %v526, %v622
      %v639 = vadd.f32 %v527, %v623
      %640 = vset.pattern.permute.xlu0 4
      %641 = vperm.xlu0 %640, %v174
      %v642 = vpop.permute.xlu0 %641
      %643 = vset.pattern.permute.xlu0 4
      %644 = vperm.xlu0 %643, %v175
      %v645 = vpop.permute.xlu0 %644
      %646 = vset.pattern.permute.xlu0 4
      %647 = vperm.xlu0 %646, %v176
      %v648 = vpop.permute.xlu0 %647
      %649 = vset.pattern.permute.xlu0 4
      %650 = vperm.xlu0 %649, %v177
      %v651 = vpop.permute.xlu0 %650
      %652 = vset.pattern.permute.xlu0 4
      %653 = vperm.xlu0 %652, %v178
      %v654 = vpop.permute.xlu0 %653
      %655 = vset.pattern.permute.xlu0 4
      %656 = vperm.xlu0 %655, %v179
      %v657 = vpop.permute.xlu0 %656
      %658 = vset.pattern.permute.xlu0 4
      %659 = vperm.xlu0 %658, %v180
      %v660 = vpop.permute.xlu0 %659
      %661 = vset.pattern.permute.xlu0 4
      %662 = vperm.xlu0 %661, %v181
      %v663 = vpop.permute.xlu0 %662
      %664 = vset.pattern.permute.xlu0 4
      %665 = vperm.xlu0 %664, %v182
      %v666 = vpop.permute.xlu0 %665
      %667 = vset.pattern.permute.xlu0 4
      %668 = vperm.xlu0 %667, %v183
      %v669 = vpop.permute.xlu0 %668
      %670 = vset.pattern.permute.xlu0 4
      %671 = vperm.xlu0 %670, %v184
      %v672 = vpop.permute.xlu0 %671
      %673 = vset.pattern.permute.xlu0 4
      %674 = vperm.xlu0 %673, %v185
      %v675 = vpop.permute.xlu0 %674
      %676 = vset.pattern.permute.xlu0 4
      %677 = vperm.xlu0 %676, %v186
      %v678 = vpop.permute.xlu0 %677
      %679 = vset.pattern.permute.xlu0 4
      %680 = vperm.xlu0 %679, %v187
      %v681 = vpop.permute.xlu0 %680
      %682 = vset.pattern.permute.xlu0 4
      %683 = vperm.xlu0 %682, %v188
      %v684 = vpop.permute.xlu0 %683
      %685 = vset.pattern.permute.xlu0 4
      %686 = vperm.xlu0 %685, %v189
      %v687 = vpop.permute.xlu0 %686
      %vm688 = vcmp.eq.s32.totalorder %v191, %v642
      %vm689 = vcmp.eq.s32.totalorder %v191, %v645
      %vm690 = vcmp.eq.s32.totalorder %v191, %v648
      %vm691 = vcmp.eq.s32.totalorder %v191, %v651
      %vm692 = vcmp.eq.s32.totalorder %v191, %v654
      %vm693 = vcmp.eq.s32.totalorder %v191, %v657
      %vm694 = vcmp.eq.s32.totalorder %v191, %v660
      %vm695 = vcmp.eq.s32.totalorder %v191, %v663
      %vm696 = vcmp.eq.s32.totalorder %v191, %v666
      %vm697 = vcmp.eq.s32.totalorder %v191, %v669
      %vm698 = vcmp.eq.s32.totalorder %v191, %v672
      %vm699 = vcmp.eq.s32.totalorder %v191, %v675
      %vm700 = vcmp.eq.s32.totalorder %v191, %v678
      %vm701 = vcmp.eq.s32.totalorder %v191, %v681
      %vm702 = vcmp.eq.s32.totalorder %v191, %v684
      %vm703 = vcmp.eq.s32.totalorder %v191, %v687
      %v704 = vsel %vm688, 1, 0
      %v705 = vsel %vm689, 1, 0
      %v706 = vsel %vm690, 1, 0
      %v707 = vsel %vm691, 1, 0
      %v708 = vsel %vm692, 1, 0
      %v709 = vsel %vm693, 1, 0
      %v710 = vsel %vm694, 1, 0
      %v711 = vsel %vm695, 1, 0
      %v712 = vsel %vm696, 1, 0
      %v713 = vsel %vm697, 1, 0
      %v714 = vsel %vm698, 1, 0
      %v715 = vsel %vm699, 1, 0
      %v716 = vsel %vm700, 1, 0
      %v717 = vsel %vm701, 1, 0
      %v718 = vsel %vm702, 1, 0
      %v719 = vsel %vm703, 1, 0
      %v720 = vcvt.s32.f32 %v704
      %v721 = vcvt.s32.f32 %v705
      %v722 = vcvt.s32.f32 %v706
      %v723 = vcvt.s32.f32 %v707
      %v724 = vcvt.s32.f32 %v708
      %v725 = vcvt.s32.f32 %v709
      %v726 = vcvt.s32.f32 %v710
      %v727 = vcvt.s32.f32 %v711
      %v728 = vcvt.s32.f32 %v712
      %v729 = vcvt.s32.f32 %v713
      %v730 = vcvt.s32.f32 %v714
      %v731 = vcvt.s32.f32 %v715
      %v732 = vcvt.s32.f32 %v716
      %v733 = vcvt.s32.f32 %v717
      %v734 = vcvt.s32.f32 %v718
      %v735 = vcvt.s32.f32 %v719
      %v736 = vadd.f32 %v624, %v720
      %v737 = vadd.f32 %v625, %v721
      %v738 = vadd.f32 %v626, %v722
      %v739 = vadd.f32 %v627, %v723
      %v740 = vadd.f32 %v628, %v724
      %v741 = vadd.f32 %v629, %v725
      %v742 = vadd.f32 %v630, %v726
      %v743 = vadd.f32 %v631, %v727
      %v744 = vadd.f32 %v632, %v728
      %v745 = vadd.f32 %v633, %v729
      %v746 = vadd.f32 %v634, %v730
      %v747 = vadd.f32 %v635, %v731
      %v748 = vadd.f32 %v636, %v732
      %v749 = vadd.f32 %v637, %v733
      %v750 = vadd.f32 %v638, %v734
      %v751 = vadd.f32 %v639, %v735
      %752 = vset.pattern.permute.xlu0 5
      %753 = vperm.xlu0 %752, %v174
      %v754 = vpop.permute.xlu0 %753
      %755 = vset.pattern.permute.xlu0 5
      %756 = vperm.xlu0 %755, %v175
      %v757 = vpop.permute.xlu0 %756
      %758 = vset.pattern.permute.xlu0 5
      %759 = vperm.xlu0 %758, %v176
      %v760 = vpop.permute.xlu0 %759
      %761 = vset.pattern.permute.xlu0 5
      %762 = vperm.xlu0 %761, %v177
      %v763 = vpop.permute.xlu0 %762
      %764 = vset.pattern.permute.xlu0 5
      %765 = vperm.xlu0 %764, %v178
      %v766 = vpop.permute.xlu0 %765
      %767 = vset.pattern.permute.xlu0 5
      %768 = vperm.xlu0 %767, %v179
      %v769 = vpop.permute.xlu0 %768
      %770 = vset.pattern.permute.xlu0 5
      %771 = vperm.xlu0 %770, %v180
      %v772 = vpop.permute.xlu0 %771
      %773 = vset.pattern.permute.xlu0 5
      %774 = vperm.xlu0 %773, %v181
      %v775 = vpop.permute.xlu0 %774
      %776 = vset.pattern.permute.xlu0 5
      %777 = vperm.xlu0 %776, %v182
      %v778 = vpop.permute.xlu0 %777
      %779 = vset.pattern.permute.xlu0 5
      %780 = vperm.xlu0 %779, %v183
      %v781 = vpop.permute.xlu0 %780
      %782 = vset.pattern.permute.xlu0 5
      %783 = vperm.xlu0 %782, %v184
      %v784 = vpop.permute.xlu0 %783
      %785 = vset.pattern.permute.xlu0 5
      %786 = vperm.xlu0 %785, %v185
      %v787 = vpop.permute.xlu0 %786
      %788 = vset.pattern.permute.xlu0 5
      %789 = vperm.xlu0 %788, %v186
      %v790 = vpop.permute.xlu0 %789
      %791 = vset.pattern.permute.xlu0 5
      %792 = vperm.xlu0 %791, %v187
      %v793 = vpop.permute.xlu0 %792
      %794 = vset.pattern.permute.xlu0 5
      %795 = vperm.xlu0 %794, %v188
      %v796 = vpop.permute.xlu0 %795
      %797 = vset.pattern.permute.xlu0 5
      %798 = vperm.xlu0 %797, %v189
      %v799 = vpop.permute.xlu0 %798
      %vm800 = vcmp.eq.s32.totalorder %v191, %v754
      %vm801 = vcmp.eq.s32.totalorder %v191, %v757
      %vm802 = vcmp.eq.s32.totalorder %v191, %v760
      %vm803 = vcmp.eq.s32.totalorder %v191, %v763
      %vm804 = vcmp.eq.s32.totalorder %v191, %v766
      %vm805 = vcmp.eq.s32.totalorder %v191, %v769
      %vm806 = vcmp.eq.s32.totalorder %v191, %v772
      %vm807 = vcmp.eq.s32.totalorder %v191, %v775
      %vm808 = vcmp.eq.s32.totalorder %v191, %v778
      %vm809 = vcmp.eq.s32.totalorder %v191, %v781
      %vm810 = vcmp.eq.s32.totalorder %v191, %v784
      %vm811 = vcmp.eq.s32.totalorder %v191, %v787
      %vm812 = vcmp.eq.s32.totalorder %v191, %v790
      %vm813 = vcmp.eq.s32.totalorder %v191, %v793
      %vm814 = vcmp.eq.s32.totalorder %v191, %v796
      %vm815 = vcmp.eq.s32.totalorder %v191, %v799
      %v816 = vsel %vm800, 1, 0
      %v817 = vsel %vm801, 1, 0
      %v818 = vsel %vm802, 1, 0
      %v819 = vsel %vm803, 1, 0
      %v820 = vsel %vm804, 1, 0
      %v821 = vsel %vm805, 1, 0
      %v822 = vsel %vm806, 1, 0
      %v823 = vsel %vm807, 1, 0
      %v824 = vsel %vm808, 1, 0
      %v825 = vsel %vm809, 1, 0
      %v826 = vsel %vm810, 1, 0
      %v827 = vsel %vm811, 1, 0
      %v828 = vsel %vm812, 1, 0
      %v829 = vsel %vm813, 1, 0
      %v830 = vsel %vm814, 1, 0
      %v831 = vsel %vm815, 1, 0
      %v832 = vcvt.s32.f32 %v816
      %v833 = vcvt.s32.f32 %v817
      %v834 = vcvt.s32.f32 %v818
      %v835 = vcvt.s32.f32 %v819
      %v836 = vcvt.s32.f32 %v820
      %v837 = vcvt.s32.f32 %v821
      %v838 = vcvt.s32.f32 %v822
      %v839 = vcvt.s32.f32 %v823
      %v840 = vcvt.s32.f32 %v824
      %v841 = vcvt.s32.f32 %v825
      %v842 = vcvt.s32.f32 %v826
      %v843 = vcvt.s32.f32 %v827
      %v844 = vcvt.s32.f32 %v828
      %v845 = vcvt.s32.f32 %v829
      %v846 = vcvt.s32.f32 %v830
      %v847 = vcvt.s32.f32 %v831
      %v848 = vadd.f32 %v736, %v832
      %v849 = vadd.f32 %v737, %v833
      %v850 = vadd.f32 %v738, %v834
      %v851 = vadd.f32 %v739, %v835
      %v852 = vadd.f32 %v740, %v836
      %v853 = vadd.f32 %v741, %v837
      %v854 = vadd.f32 %v742, %v838
      %v855 = vadd.f32 %v743, %v839
      %v856 = vadd.f32 %v744, %v840
      %v857 = vadd.f32 %v745, %v841
      %v858 = vadd.f32 %v746, %v842
      %v859 = vadd.f32 %v747, %v843
      %v860 = vadd.f32 %v748, %v844
      %v861 = vadd.f32 %v749, %v845
      %v862 = vadd.f32 %v750, %v846
      %v863 = vadd.f32 %v751, %v847
      %864 = vset.pattern.permute.xlu0 6
      %865 = vperm.xlu0 %864, %v174
      %v866 = vpop.permute.xlu0 %865
      %867 = vset.pattern.permute.xlu0 6
      %868 = vperm.xlu0 %867, %v175
      %v869 = vpop.permute.xlu0 %868
      %870 = vset.pattern.permute.xlu0 6
      %871 = vperm.xlu0 %870, %v176
      %v872 = vpop.permute.xlu0 %871
      %873 = vset.pattern.permute.xlu0 6
      %874 = vperm.xlu0 %873, %v177
      %v875 = vpop.permute.xlu0 %874
      %876 = vset.pattern.permute.xlu0 6
      %877 = vperm.xlu0 %876, %v178
      %v878 = vpop.permute.xlu0 %877
      %879 = vset.pattern.permute.xlu0 6
      %880 = vperm.xlu0 %879, %v179
      %v881 = vpop.permute.xlu0 %880
      %882 = vset.pattern.permute.xlu0 6
      %883 = vperm.xlu0 %882, %v180
      %v884 = vpop.permute.xlu0 %883
      %885 = vset.pattern.permute.xlu0 6
      %886 = vperm.xlu0 %885, %v181
      %v887 = vpop.permute.xlu0 %886
      %888 = vset.pattern.permute.xlu0 6
      %889 = vperm.xlu0 %888, %v182
      %v890 = vpop.permute.xlu0 %889
      %891 = vset.pattern.permute.xlu0 6
      %892 = vperm.xlu0 %891, %v183
      %v893 = vpop.permute.xlu0 %892
      %894 = vset.pattern.permute.xlu0 6
      %895 = vperm.xlu0 %894, %v184
      %v896 = vpop.permute.xlu0 %895
      %897 = vset.pattern.permute.xlu0 6
      %898 = vperm.xlu0 %897, %v185
      %v899 = vpop.permute.xlu0 %898
      %900 = vset.pattern.permute.xlu0 6
      %901 = vperm.xlu0 %900, %v186
      %v902 = vpop.permute.xlu0 %901
      %903 = vset.pattern.permute.xlu0 6
      %904 = vperm.xlu0 %903, %v187
      %v905 = vpop.permute.xlu0 %904
      %906 = vset.pattern.permute.xlu0 6
      %907 = vperm.xlu0 %906, %v188
      %v908 = vpop.permute.xlu0 %907
      %909 = vset.pattern.permute.xlu0 6
      %910 = vperm.xlu0 %909, %v189
      %v911 = vpop.permute.xlu0 %910
      %vm912 = vcmp.eq.s32.totalorder %v191, %v866
      %vm913 = vcmp.eq.s32.totalorder %v191, %v869
      %vm914 = vcmp.eq.s32.totalorder %v191, %v872
      %vm915 = vcmp.eq.s32.totalorder %v191, %v875
      %vm916 = vcmp.eq.s32.totalorder %v191, %v878
      %vm917 = vcmp.eq.s32.totalorder %v191, %v881
      %vm918 = vcmp.eq.s32.totalorder %v191, %v884
      %vm919 = vcmp.eq.s32.totalorder %v191, %v887
      %vm920 = vcmp.eq.s32.totalorder %v191, %v890
      %vm921 = vcmp.eq.s32.totalorder %v191, %v893
      %vm922 = vcmp.eq.s32.totalorder %v191, %v896
      %vm923 = vcmp.eq.s32.totalorder %v191, %v899
      %vm924 = vcmp.eq.s32.totalorder %v191, %v902
      %vm925 = vcmp.eq.s32.totalorder %v191, %v905
      %vm926 = vcmp.eq.s32.totalorder %v191, %v908
      %vm927 = vcmp.eq.s32.totalorder %v191, %v911
      %v928 = vsel %vm912, 1, 0
      %v929 = vsel %vm913, 1, 0
      %v930 = vsel %vm914, 1, 0
      %v931 = vsel %vm915, 1, 0
      %v932 = vsel %vm916, 1, 0
      %v933 = vsel %vm917, 1, 0
      %v934 = vsel %vm918, 1, 0
      %v935 = vsel %vm919, 1, 0
      %v936 = vsel %vm920, 1, 0
      %v937 = vsel %vm921, 1, 0
      %v938 = vsel %vm922, 1, 0
      %v939 = vsel %vm923, 1, 0
      %v940 = vsel %vm924, 1, 0
      %v941 = vsel %vm925, 1, 0
      %v942 = vsel %vm926, 1, 0
      %v943 = vsel %vm927, 1, 0
      %v944 = vcvt.s32.f32 %v928
      %v945 = vcvt.s32.f32 %v929
      %v946 = vcvt.s32.f32 %v930
      %v947 = vcvt.s32.f32 %v931
      %v948 = vcvt.s32.f32 %v932
      %v949 = vcvt.s32.f32 %v933
      %v950 = vcvt.s32.f32 %v934
      %v951 = vcvt.s32.f32 %v935
      %v952 = vcvt.s32.f32 %v936
      %v953 = vcvt.s32.f32 %v937
      %v954 = vcvt.s32.f32 %v938
      %v955 = vcvt.s32.f32 %v939
      %v956 = vcvt.s32.f32 %v940
      %v957 = vcvt.s32.f32 %v941
      %v958 = vcvt.s32.f32 %v942
      %v959 = vcvt.s32.f32 %v943
      %v960 = vadd.f32 %v848, %v944
      %v961 = vadd.f32 %v849, %v945
      %v962 = vadd.f32 %v850, %v946
      %v963 = vadd.f32 %v851, %v947
      %v964 = vadd.f32 %v852, %v948
      %v965 = vadd.f32 %v853, %v949
      %v966 = vadd.f32 %v854, %v950
      %v967 = vadd.f32 %v855, %v951
      %v968 = vadd.f32 %v856, %v952
      %v969 = vadd.f32 %v857, %v953
      %v970 = vadd.f32 %v858, %v954
      %v971 = vadd.f32 %v859, %v955
      %v972 = vadd.f32 %v860, %v956
      %v973 = vadd.f32 %v861, %v957
      %v974 = vadd.f32 %v862, %v958
      %v975 = vadd.f32 %v863, %v959
      %976 = vset.pattern.permute.xlu0 7
      %977 = vperm.xlu0 %976, %v174
      %v978 = vpop.permute.xlu0 %977
      %979 = vset.pattern.permute.xlu0 7
      %980 = vperm.xlu0 %979, %v175
      %v981 = vpop.permute.xlu0 %980
      %982 = vset.pattern.permute.xlu0 7
      %983 = vperm.xlu0 %982, %v176
      %v984 = vpop.permute.xlu0 %983
      %985 = vset.pattern.permute.xlu0 7
      %986 = vperm.xlu0 %985, %v177
      %v987 = vpop.permute.xlu0 %986
      %988 = vset.pattern.permute.xlu0 7
      %989 = vperm.xlu0 %988, %v178
      %v990 = vpop.permute.xlu0 %989
      %991 = vset.pattern.permute.xlu0 7
      %992 = vperm.xlu0 %991, %v179
      %v993 = vpop.permute.xlu0 %992
      %994 = vset.pattern.permute.xlu0 7
      %995 = vperm.xlu0 %994, %v180
      %v996 = vpop.permute.xlu0 %995
      %997 = vset.pattern.permute.xlu0 7
      %998 = vperm.xlu0 %997, %v181
      %v999 = vpop.permute.xlu0 %998
      %1000 = vset.pattern.permute.xlu0 7
      %1001 = vperm.xlu0 %1000, %v182
      %v1002 = vpop.permute.xlu0 %1001
      %1003 = vset.pattern.permute.xlu0 7
      %1004 = vperm.xlu0 %1003, %v183
      %v1005 = vpop.permute.xlu0 %1004
      %1006 = vset.pattern.permute.xlu0 7
      %1007 = vperm.xlu0 %1006, %v184
      %v1008 = vpop.permute.xlu0 %1007
      %1009 = vset.pattern.permute.xlu0 7
      %1010 = vperm.xlu0 %1009, %v185
      %v1011 = vpop.permute.xlu0 %1010
      %1012 = vset.pattern.permute.xlu0 7
      %1013 = vperm.xlu0 %1012, %v186
      %v1014 = vpop.permute.xlu0 %1013
      %1015 = vset.pattern.permute.xlu0 7
      %1016 = vperm.xlu0 %1015, %v187
      %v1017 = vpop.permute.xlu0 %1016
      %1018 = vset.pattern.permute.xlu0 7
      %1019 = vperm.xlu0 %1018, %v188
      %v1020 = vpop.permute.xlu0 %1019
      %1021 = vset.pattern.permute.xlu0 7
      %1022 = vperm.xlu0 %1021, %v189
      %v1023 = vpop.permute.xlu0 %1022
      %vm1024 = vcmp.eq.s32.totalorder %v191, %v978
      %vm1025 = vcmp.eq.s32.totalorder %v191, %v981
      %vm1026 = vcmp.eq.s32.totalorder %v191, %v984
      %vm1027 = vcmp.eq.s32.totalorder %v191, %v987
      %vm1028 = vcmp.eq.s32.totalorder %v191, %v990
      %vm1029 = vcmp.eq.s32.totalorder %v191, %v993
      %vm1030 = vcmp.eq.s32.totalorder %v191, %v996
      %vm1031 = vcmp.eq.s32.totalorder %v191, %v999
      %vm1032 = vcmp.eq.s32.totalorder %v191, %v1002
      %vm1033 = vcmp.eq.s32.totalorder %v191, %v1005
      %vm1034 = vcmp.eq.s32.totalorder %v191, %v1008
      %vm1035 = vcmp.eq.s32.totalorder %v191, %v1011
      %vm1036 = vcmp.eq.s32.totalorder %v191, %v1014
      %vm1037 = vcmp.eq.s32.totalorder %v191, %v1017
      %vm1038 = vcmp.eq.s32.totalorder %v191, %v1020
      %vm1039 = vcmp.eq.s32.totalorder %v191, %v1023
      %v1040 = vsel %vm1024, 1, 0
      %v1041 = vsel %vm1025, 1, 0
      %v1042 = vsel %vm1026, 1, 0
      %v1043 = vsel %vm1027, 1, 0
      %v1044 = vsel %vm1028, 1, 0
      %v1045 = vsel %vm1029, 1, 0
      %v1046 = vsel %vm1030, 1, 0
      %v1047 = vsel %vm1031, 1, 0
      %v1048 = vsel %vm1032, 1, 0
      %v1049 = vsel %vm1033, 1, 0
      %v1050 = vsel %vm1034, 1, 0
      %v1051 = vsel %vm1035, 1, 0
      %v1052 = vsel %vm1036, 1, 0
      %v1053 = vsel %vm1037, 1, 0
      %v1054 = vsel %vm1038, 1, 0
      %v1055 = vsel %vm1039, 1, 0
      %v1056 = vcvt.s32.f32 %v1040
      %v1057 = vcvt.s32.f32 %v1041
      %v1058 = vcvt.s32.f32 %v1042
      %v1059 = vcvt.s32.f32 %v1043
      %v1060 = vcvt.s32.f32 %v1044
      %v1061 = vcvt.s32.f32 %v1045
      %v1062 = vcvt.s32.f32 %v1046
      %v1063 = vcvt.s32.f32 %v1047
      %v1064 = vcvt.s32.f32 %v1048
      %v1065 = vcvt.s32.f32 %v1049
      %v1066 = vcvt.s32.f32 %v1050
      %v1067 = vcvt.s32.f32 %v1051
      %v1068 = vcvt.s32.f32 %v1052
      %v1069 = vcvt.s32.f32 %v1053
      %v1070 = vcvt.s32.f32 %v1054
      %v1071 = vcvt.s32.f32 %v1055
      %v1072 = vadd.f32 %v960, %v1056
      %v1073 = vadd.f32 %v961, %v1057
      %v1074 = vadd.f32 %v962, %v1058
      %v1075 = vadd.f32 %v963, %v1059
      %v1076 = vadd.f32 %v964, %v1060
      %v1077 = vadd.f32 %v965, %v1061
      %v1078 = vadd.f32 %v966, %v1062
      %v1079 = vadd.f32 %v967, %v1063
      %v1080 = vadd.f32 %v968, %v1064
      %v1081 = vadd.f32 %v969, %v1065
      %v1082 = vadd.f32 %v970, %v1066
      %v1083 = vadd.f32 %v971, %v1067
      %v1084 = vadd.f32 %v972, %v1068
      %v1085 = vadd.f32 %v973, %v1069
      %v1086 = vadd.f32 %v974, %v1070
      %v1087 = vadd.f32 %v975, %v1071
      %v1088 = vmul.f32 %v1072, 0.125
      %v1089 = vmul.f32 %v1073, 0.125
      %v1090 = vmul.f32 %v1074, 0.125
      %v1091 = vmul.f32 %v1075, 0.125
      %v1092 = vmul.f32 %v1076, 0.125
      %v1093 = vmul.f32 %v1077, 0.125
      %v1094 = vmul.f32 %v1078, 0.125
      %v1095 = vmul.f32 %v1079, 0.125
      %v1096 = vmul.f32 %v1080, 0.125
      %v1097 = vmul.f32 %v1081, 0.125
      %v1098 = vmul.f32 %v1082, 0.125
      %v1099 = vmul.f32 %v1083, 0.125
      %v1100 = vmul.f32 %v1084, 0.125
      %v1101 = vmul.f32 %v1085, 0.125
      %v1102 = vmul.f32 %v1086, 0.125
      %v1103 = vmul.f32 %v1087, 0.125
      %v1104 = vld [vmem:[%s1] sm:$0xff]
      %v1105 = vld [vmem:[%s1 + $0x8] sm:$0xff]
      %v1106 = vld [vmem:[%s1 + $0x10] sm:$0xff]
      %v1107 = vld [vmem:[%s1 + $0x18] sm:$0xff]
      %v1108 = vld [vmem:[%s1 + $0x20] sm:$0xff]
      %v1109 = vld [vmem:[%s1 + $0x28] sm:$0xff]
      %v1110 = vld [vmem:[%s1 + $0x30] sm:$0xff]
      %v1111 = vld [vmem:[%s1 + $0x38] sm:$0xff]
      %v1112 = vld [vmem:[%s1 + $0x40] sm:$0xff]
      %v1113 = vld [vmem:[%s1 + $0x48] sm:$0xff]
      %v1114 = vld [vmem:[%s1 + $0x50] sm:$0xff]
      %v1115 = vld [vmem:[%s1 + $0x58] sm:$0xff]
      %v1116 = vld [vmem:[%s1 + $0x60] sm:$0xff]
      %v1117 = vld [vmem:[%s1 + $0x68] sm:$0xff]
      %v1118 = vld [vmem:[%s1 + $0x70] sm:$0xff]
      %v1119 = vld [vmem:[%s1 + $0x78] sm:$0xff]
      %v1120 = vld [vmem:[%s2] sm:$0x1]
      %v1122 = vlaneseq
      %v1123 = vshrl.u32 %v1122, 7
      %v1124 = vsub.s32 0, %v1123
      %v1125 = vrot.slane %v1120, %v1124
      %1127 = vmatprep.subr.mxu0 0.0
      %1128 = vmatpush1.msra.mxu0 %v1119
      %1129 = vmatprep.subr.mxu0 0.0
      %1130 = vmatpush1.msra.mxu0 %v1118
      %1131 = vmatprep.subr.mxu0 0.0
      %1132 = vmatpush1.msra.mxu0 %v1117
      %1133 = vmatprep.subr.mxu0 0.0
      %1134 = vmatpush1.msra.mxu0 %v1116
      %1135 = vmatprep.subr.mxu0 0.0
      %1136 = vmatpush1.msra.mxu0 %v1115
      %1137 = vmatprep.subr.mxu0 0.0
      %1138 = vmatpush1.msra.mxu0 %v1114
      %1139 = vmatprep.subr.mxu0 0.0
      %1140 = vmatpush1.msra.mxu0 %v1113
      %1141 = vmatprep.subr.mxu0 0.0
      %1142 = vmatpush1.msra.mxu0 %v1112
      %1143 = vmatprep.subr.mxu0 0.0
      %1144 = vmatpush1.msra.mxu0 %v1111
      %1145 = vmatprep.subr.mxu0 0.0
      %1146 = vmatpush1.msra.mxu0 %v1110
      %1147 = vmatprep.subr.mxu0 0.0
      %1148 = vmatpush1.msra.mxu0 %v1109
      %1149 = vmatprep.subr.mxu0 0.0
      %1150 = vmatpush1.msra.mxu0 %v1108
      %1151 = vmatprep.subr.mxu0 0.0
      %1152 = vmatpush1.msra.mxu0 %v1107
      %1153 = vmatprep.subr.mxu0 0.0
      %1154 = vmatpush1.msra.mxu0 %v1106
      %1155 = vmatprep.subr.mxu0 0.0
      %1156 = vmatpush1.msra.mxu0 %v1105
      %1157 = vmatprep.subr.mxu0 0.0
      %1158 = vmatpush1.msra.mxu0 %v1104
      %1159 = vmatprep.subr.mxu0 0.0
      %1160 = vmatpush2.msra.mxu0 0.0
      %1161 = vmatprep.subr.mxu0 0.0
      %1162 = vmatpush2.msra.mxu0 0.0
      %1163 = vmatprep.subr.mxu0 0.0
      %1164 = vmatpush2.msra.mxu0 0.0
      %1165 = vmatprep.subr.mxu0 0.0
      %1166 = vmatpush2.msra.mxu0 0.0
      %1167 = vmatprep.subr.mxu0 0.0
      %1168 = vmatpush2.msra.mxu0 0.0
      %1169 = vmatprep.subr.mxu0 0.0
      %1170 = vmatpush2.msra.mxu0 0.0
      %1171 = vmatprep.subr.mxu0 0.0
      %1172 = vmatpush2.msra.mxu0 0.0
      %1173 = vmatprep.subr.mxu0 0.0
      %1174 = vmatpush2.msra.mxu0 0.0
      %1175 = vmatprep.subr.mxu0 0.0
      %1176 = vmatpush2.msra.mxu0 0.0
      %1177 = vmatprep.subr.mxu0 0.0
      %1178 = vmatpush2.msra.mxu0 0.0
      %1179 = vmatprep.subr.mxu0 0.0
      %1180 = vmatpush2.msra.mxu0 0.0
      %1181 = vmatprep.subr.mxu0 0.0
      %1182 = vmatpush2.msra.mxu0 0.0
      %1183 = vmatprep.subr.mxu0 0.0
      %1184 = vmatpush2.msra.mxu0 0.0
      %1185 = vmatprep.subr.mxu0 0.0
      %1186 = vmatpush2.msra.mxu0 0.0
      %1187 = vmatprep.subr.mxu0 0.0
      %1188 = vmatpush2.msra.mxu0 0.0
      %1189 = vmatprep.subr.mxu0 0.0
      %1190 = vmatpush2.msra.mxu0 0.0
      %1191 = vmatprep.mubr.f32.mxu0 0.0
      %1192 = vmatmul.mubr.f32.gmra.mxu0 %v1088
      %v1193 = vpop.f32.mrf.mxu0
      %v1194 = vadd.f32 %v1125, %v1193
      %v1195 = vpop.f32.mrf.mxu0
      %1196 = vmatprep.mubr.f32.mxu0 0.0
      %1197 = vmatmul.mubr.f32.gmra.mxu0 %v1089
      %v1198 = vpop.f32.mrf.mxu0
      %v1199 = vadd.f32 %v1125, %v1198
      %v1200 = vpop.f32.mrf.mxu0
      %1201 = vmatprep.mubr.f32.mxu0 0.0
      %1202 = vmatmul.mubr.f32.gmra.mxu0 %v1090
      %v1203 = vpop.f32.mrf.mxu0
      %v1204 = vadd.f32 %v1125, %v1203
      %v1205 = vpop.f32.mrf.mxu0
      %1206 = vmatprep.mubr.f32.mxu0 0.0
      %1207 = vmatmul.mubr.f32.gmra.mxu0 %v1091
      %v1208 = vpop.f32.mrf.mxu0
      %v1209 = vadd.f32 %v1125, %v1208
      %v1210 = vpop.f32.mrf.mxu0
      %1211 = vmatprep.mubr.f32.mxu0 0.0
      %1212 = vmatmul.mubr.f32.gmra.mxu0 %v1092
      %v1213 = vpop.f32.mrf.mxu0
      %v1214 = vadd.f32 %v1125, %v1213
      %v1215 = vpop.f32.mrf.mxu0
      %1216 = vmatprep.mubr.f32.mxu0 0.0
      %1217 = vmatmul.mubr.f32.gmra.mxu0 %v1093
      %v1218 = vpop.f32.mrf.mxu0
      %v1219 = vadd.f32 %v1125, %v1218
      %v1220 = vpop.f32.mrf.mxu0
      %1221 = vmatprep.mubr.f32.mxu0 0.0
      %1222 = vmatmul.mubr.f32.gmra.mxu0 %v1094
      %v1223 = vpop.f32.mrf.mxu0
      %v1224 = vadd.f32 %v1125, %v1223
      %v1225 = vpop.f32.mrf.mxu0
      %1226 = vmatprep.mubr.f32.mxu0 0.0
      %1227 = vmatmul.mubr.f32.gmra.mxu0 %v1095
      %v1228 = vpop.f32.mrf.mxu0
      %v1229 = vadd.f32 %v1125, %v1228
      %v1230 = vpop.f32.mrf.mxu0
      %1231 = vmatprep.mubr.f32.mxu0 0.0
      %1232 = vmatmul.mubr.f32.gmra.mxu0 %v1096
      %v1233 = vpop.f32.mrf.mxu0
      %v1234 = vadd.f32 %v1125, %v1233
      %v1235 = vpop.f32.mrf.mxu0
      %1236 = vmatprep.mubr.f32.mxu0 0.0
      %1237 = vmatmul.mubr.f32.gmra.mxu0 %v1097
      %v1238 = vpop.f32.mrf.mxu0
      %v1239 = vadd.f32 %v1125, %v1238
      %v1240 = vpop.f32.mrf.mxu0
      %1241 = vmatprep.mubr.f32.mxu0 0.0
      %1242 = vmatmul.mubr.f32.gmra.mxu0 %v1098
      %v1243 = vpop.f32.mrf.mxu0
      %v1244 = vadd.f32 %v1125, %v1243
      %v1245 = vpop.f32.mrf.mxu0
      %1246 = vmatprep.mubr.f32.mxu0 0.0
      %1247 = vmatmul.mubr.f32.gmra.mxu0 %v1099
      %v1248 = vpop.f32.mrf.mxu0
      %v1249 = vadd.f32 %v1125, %v1248
      %v1250 = vpop.f32.mrf.mxu0
      %1251 = vmatprep.mubr.f32.mxu0 0.0
      %1252 = vmatmul.mubr.f32.gmra.mxu0 %v1100
      %v1253 = vpop.f32.mrf.mxu0
      %v1254 = vadd.f32 %v1125, %v1253
      %v1255 = vpop.f32.mrf.mxu0
      %1256 = vmatprep.mubr.f32.mxu0 0.0
      %1257 = vmatmul.mubr.f32.gmra.mxu0 %v1101
      %v1258 = vpop.f32.mrf.mxu0
      %v1259 = vadd.f32 %v1125, %v1258
      %v1260 = vpop.f32.mrf.mxu0
      %1261 = vmatprep.mubr.f32.mxu0 0.0
      %1262 = vmatmul.mubr.f32.gmra.mxu0 %v1102
      %v1263 = vpop.f32.mrf.mxu0
      %v1264 = vadd.f32 %v1125, %v1263
      %v1265 = vpop.f32.mrf.mxu0
      %1266 = vmatprep.mubr.f32.mxu0 0.0
      %1267 = vmatmul.mubr.f32.gmra.mxu0 %v1103
      %v1268 = vpop.f32.mrf.mxu0
      %v1269 = vadd.f32 %v1125, %v1268
      %v1270 = vpop.f32.mrf.mxu0
      %1271 = vdwg.mxu0
      %v1272 = vsub.f32 0.0, %v1194
      %v1273 = vsub.f32 0.0, %v1199
      %v1274 = vsub.f32 0.0, %v1204
      %v1275 = vsub.f32 0.0, %v1209
      %v1276 = vsub.f32 0.0, %v1214
      %v1277 = vsub.f32 0.0, %v1219
      %v1278 = vsub.f32 0.0, %v1224
      %v1279 = vsub.f32 0.0, %v1229
      %v1280 = vsub.f32 0.0, %v1234
      %v1281 = vsub.f32 0.0, %v1239
      %v1282 = vsub.f32 0.0, %v1244
      %v1283 = vsub.f32 0.0, %v1249
      %v1284 = vsub.f32 0.0, %v1254
      %v1285 = vsub.f32 0.0, %v1259
      %v1286 = vsub.f32 0.0, %v1264
      %v1287 = vsub.f32 0.0, %v1269
      %v1288 = vmul.f32 %v1272, 1.442695
      %v1289 = vpow.pop %v1288
      %v1290 = vmul.f32 %v1273, 1.442695
      %v1291 = vpow.pop %v1290
      %v1292 = vmul.f32 %v1274, 1.442695
      %v1293 = vpow.pop %v1292
      %v1294 = vmul.f32 %v1275, 1.442695
      %v1295 = vpow.pop %v1294
      %v1296 = vmul.f32 %v1276, 1.442695
      %v1297 = vpow.pop %v1296
      %v1298 = vmul.f32 %v1277, 1.442695
      %v1299 = vpow.pop %v1298
      %v1300 = vmul.f32 %v1278, 1.442695
      %v1301 = vpow.pop %v1300
      %v1302 = vmul.f32 %v1279, 1.442695
      %v1303 = vpow.pop %v1302
      %v1304 = vmul.f32 %v1280, 1.442695
      %v1305 = vpow.pop %v1304
      %v1306 = vmul.f32 %v1281, 1.442695
      %v1307 = vpow.pop %v1306
      %v1308 = vmul.f32 %v1282, 1.442695
      %v1309 = vpow.pop %v1308
      %v1310 = vmul.f32 %v1283, 1.442695
      %v1311 = vpow.pop %v1310
      %v1312 = vmul.f32 %v1284, 1.442695
      %v1313 = vpow.pop %v1312
      %v1314 = vmul.f32 %v1285, 1.442695
      %v1315 = vpow.pop %v1314
      %v1316 = vmul.f32 %v1286, 1.442695
      %v1317 = vpow.pop %v1316
      %v1318 = vmul.f32 %v1287, 1.442695
      %v1319 = vpow.pop %v1318
      %v1320 = vadd.f32 %v1289, 1.0
      %v1321 = vadd.f32 %v1291, 1.0
      %v1322 = vadd.f32 %v1293, 1.0
      %v1323 = vadd.f32 %v1295, 1.0
      %v1324 = vadd.f32 %v1297, 1.0
      %v1325 = vadd.f32 %v1299, 1.0
      %v1326 = vadd.f32 %v1301, 1.0
      %v1327 = vadd.f32 %v1303, 1.0
      %v1328 = vadd.f32 %v1305, 1.0
      %v1329 = vadd.f32 %v1307, 1.0
      %v1330 = vadd.f32 %v1309, 1.0
      %v1331 = vadd.f32 %v1311, 1.0
      %v1332 = vadd.f32 %v1313, 1.0
      %v1333 = vadd.f32 %v1315, 1.0
      %v1334 = vadd.f32 %v1317, 1.0
      %v1335 = vadd.f32 %v1319, 1.0
      %v1336 = vrcp.pop %v1320
      %v1337 = vmul.f32 1.0, %v1336
      %v1338 = vrcp.pop %v1321
      %v1339 = vmul.f32 1.0, %v1338
      %v1340 = vrcp.pop %v1322
      %v1341 = vmul.f32 1.0, %v1340
      %v1342 = vrcp.pop %v1323
      %v1343 = vmul.f32 1.0, %v1342
      %v1344 = vrcp.pop %v1324
      %v1345 = vmul.f32 1.0, %v1344
      %v1346 = vrcp.pop %v1325
      %v1347 = vmul.f32 1.0, %v1346
      %v1348 = vrcp.pop %v1326
      %v1349 = vmul.f32 1.0, %v1348
      %v1350 = vrcp.pop %v1327
      %v1351 = vmul.f32 1.0, %v1350
      %v1352 = vrcp.pop %v1328
      %v1353 = vmul.f32 1.0, %v1352
      %v1354 = vrcp.pop %v1329
      %v1355 = vmul.f32 1.0, %v1354
      %v1356 = vrcp.pop %v1330
      %v1357 = vmul.f32 1.0, %v1356
      %v1358 = vrcp.pop %v1331
      %v1359 = vmul.f32 1.0, %v1358
      %v1360 = vrcp.pop %v1332
      %v1361 = vmul.f32 1.0, %v1360
      %v1362 = vrcp.pop %v1333
      %v1363 = vmul.f32 1.0, %v1362
      %v1364 = vrcp.pop %v1334
      %v1365 = vmul.f32 1.0, %v1364
      %v1366 = vrcp.pop %v1335
      %v1367 = vmul.f32 1.0, %v1366
      %1368 = vst [vmem:[%s172] sm:$0xff] %v1337
      %1369 = vst [vmem:[%s172 + $0x8] sm:$0xff] %v1339
      %1370 = vst [vmem:[%s172 + $0x10] sm:$0xff] %v1341
      %1371 = vst [vmem:[%s172 + $0x18] sm:$0xff] %v1343
      %1372 = vst [vmem:[%s172 + $0x20] sm:$0xff] %v1345
      %1373 = vst [vmem:[%s172 + $0x28] sm:$0xff] %v1347
      %1374 = vst [vmem:[%s172 + $0x30] sm:$0xff] %v1349
      %1375 = vst [vmem:[%s172 + $0x38] sm:$0xff] %v1351
      %1376 = vst [vmem:[%s172 + $0x40] sm:$0xff] %v1353
      %1377 = vst [vmem:[%s172 + $0x48] sm:$0xff] %v1355
      %1378 = vst [vmem:[%s172 + $0x50] sm:$0xff] %v1357
      %1379 = vst [vmem:[%s172 + $0x58] sm:$0xff] %v1359
      %1380 = vst [vmem:[%s172 + $0x60] sm:$0xff] %v1361
      %1381 = vst [vmem:[%s172 + $0x68] sm:$0xff] %v1363
      %1382 = vst [vmem:[%s172 + $0x70] sm:$0xff] %v1365
      %1383 = vst [vmem:[%s172 + $0x78] sm:$0xff] %v1367
      %s1384 = smul.u32 16, %s14
      %p1385 = scmp.lt.s32.totalorder %s1384, 31
      %s1386 = scalar_select %p1385, %s1384, 31
      %s1387 = smul.addr %s1386, 8
      %s1388 = scalar_lea.vmem %s3, %s1387
      // Predicated region
      $region33: #{torch_model_forward.1} parent=31 // pred_check
        %p1389 = pneg %p100
      $region34: #{torch_model_forward.1} parent=31 // pred_check_branch
        %1391 = sbr.rel (%p1389) target = $region36
      $region35: #{torch_model_forward.1} parent=31 // pred_region
        %s1392 = smul.u32 16, %s14
      $region36: #{torch_model_forward.1} parent=31 // pred_fallthru
        _
    $region32: #{torch_model_forward.1} parent=5 // pred_fallthru
      _
    %p1393 = scmp.le.s32.totalorder 2, %s9
    // Predicated region
    $region37: #{torch_model_forward.1} parent=5 // pred_check
      %p1394 = pneg %p1393
    $region38: #{torch_model_forward.1} parent=5 // pred_check_branch
      %1396 = sbr.rel (%p1394) target = $region40
    $region39: #{torch_model_forward.1} parent=5 // pred_region
      %s1397 = ssub.s32 %s9, 2
      // Predicated region
      $region41: #{torch_model_forward.1} parent=39 // pred_check
        %p1398 = pneg %p106
      $region42: #{torch_model_forward.1} parent=39 // pred_check_branch
        %1400 = sbr.rel (%p1398) target = $region44
      $region43: #{torch_model_forward.1} parent=39 // pred_region
        %s1401 = smul.u32 16, %s15
        %p1402 = scmp.lt.s32.totalorder %s1401, 31
        %s1403 = scalar_select %p1402, %s1401, 31
        %s1404 = smul.addr %s1403, 8
        %s1405 = scalar_lea.vmem %s3, %s1404
      $region44: #{torch_model_forward.1} parent=39 // pred_fallthru
        _
    $region40: #{torch_model_forward.1} parent=5 // pred_fallthru
      _
  $region6: #{torch_model_forward.1} parent=0 // loop_footer
    %s13 = sadd.s32 1, %s9
  $region7: #{torch_model_forward.1} parent=0 // loop_footer_branch
    %8 = sbr.rel target = $region3
  $region8: #{torch_model_forward.1} parent=0 // loop_exit
    _

</llo_original>
